<compile_context>
chip_gen: v7x
topology: tpu7x:2x2x1
jax: 0.10.0
libtpu: 0.0.40
codegen_flags: <defaults>
</compile_context>

<pallas_src>
import math

import jax
import jax.numpy as jnp
from jax.experimental import pallas as pl
from jax.experimental.pallas import tpu as pltpu


def _bayes_gaussian_kernel(x_ref, wm_ref, wv_ref, c_ref, mv_ref, nll_ref):
    # x_ref:   [BT, K]     f32 probabilities (one batch tile)
    # wm_ref:  [K, 1]      -2 * params                       (resident)
    # wv_ref:  [K, 1]      4 * params**2                     (resident)
    # c_ref:   [8]  SMEM   [c0, c2, c3, sum_w, exp(params_var), 0, 0, 0]
    # mv_ref:  [BT, 2]     packed output [outputs_mean | outputs_var]
    # nll_ref: [1, 8, 128] per-parallel-partition sum-NLL accumulator
    step = pl.program_id(1)

    x = x_ref[...]                                   # [BT, K]
    v = x - x * x                                    # VPU: inputs_var / 4

    mean = jnp.dot(x, wm_ref[...],
                   preferred_element_type=jnp.float32) + c_ref[3]   # [BT, 1]
    var_ = jnp.dot(v, wv_ref[...],
                   preferred_element_type=jnp.float32)              # [BT, 1]

    mv_ref[:, 0:1] = mean
    mv_ref[:, 1:2] = var_ + c_ref[4]                 # outputs_var = var_ + var

    # Per-tile sufficient statistics for the sum-NLL (scalars).
    sm = jnp.sum(mean)
    sm2 = jnp.sum(mean * mean)
    sv = jnp.sum(var_)

    n_rows = jnp.float32(x_ref.shape[0])             # static tile height
    partial = n_rows * c_ref[0] - c_ref[1] * sm + c_ref[2] * (sm2 + sv)

    @pl.when(step == 0)
    def _():
        nll_ref[...] = jnp.zeros_like(nll_ref)

    nll_ref[...] += partial                          # scalar broadcast over block


def _round_up(n, m):
    return -(-n // m) * m


def _choose_block_rows(batch, in_units):
    """Largest useful row tile: target a ~2 MiB x block (roofline-flat region)
    while keeping the double-buffered working set (2x x tile + the x - x*x
    temporary + 2x packed output tile) under a v7x-safe ~24 MiB budget."""
    budget = 24 * 1024 * 1024
    bytes_per_row = 3 * in_units * 4 + 16            # 2x x (dbl-buf) + temp + mv
    cap = max(8, budget // bytes_per_row)
    target = max(8, (2 * 1024 * 1024) // (in_units * 4))   # ~2 MiB x tile
    bt = min(cap, target, _round_up(batch, 8))
    return max(8, (bt // 8) * 8)


def bayes_gaussian_forward(inputs, targets, params, params_var, *, block_rows=None):
    """Analytic-mode forward of BayesGaussian with return_nll='sum'.

    inputs:     [B, K] probabilities
    targets:    [B]
    params:     [K, O]  (O must be 1, the module default)
    params_var: [O]
    Returns ((outputs_mean [B, 1], outputs_var [B, 1]), nll scalar).
    """
    B, K = inputs.shape
    Kw, O = params.shape
    assert K == Kw
    assert O == 1, "reference NLL broadcast requires output_units == 1"

    x = inputs.astype(jnp.float32)
    w = params.astype(jnp.float32)
    tgt = targets.astype(jnp.float32)
    pvar = jnp.exp(params_var.astype(jnp.float32))[0]        # scalar

    # ---- parameter prep (once per call, plain JAX) -------------------------
    wm = -2.0 * w                                            # [K, 1]
    wv = 4.0 * (w * w)                                       # [K, 1]
    sum_w = jnp.sum(w)                                       # scalar (O == 1)

    # ---- hoisted NLL constants (sufficient statistics of the targets) ------
    t1 = jnp.sum(tgt)
    t2 = jnp.sum(tgt * tgt)
    inv_2v = 0.5 / pvar
    half_log = 0.5 * jnp.log(2.0 * math.pi * pvar)
    b_f = jnp.float32(B)
    c0 = t2 * inv_2v + b_f * half_log
    c2 = 2.0 * t1 * inv_2v
    c3 = b_f * inv_2v
    zero = jnp.float32(0.0)
    consts = jnp.stack([c0, c2, c3, sum_w, pvar, zero, zero, zero])  # SMEM f32[8]

    # ---- tiling / padding ---------------------------------------------------
    bt = block_rows if block_rows is not None else _choose_block_rows(B, K)
    if bt % 8 != 0:
        raise ValueError(f"block_rows must be a multiple of 8, got {bt}")
    if 3 * bt * K * 4 + 16 * bt > 28 * 1024 * 1024:
        raise ValueError(f"block_rows={bt} exceeds the v7x-safe VMEM budget")

    num_tiles = -(-B // bt)
    n_par = 2 if num_tiles > 1 else 1            # shard across v7x's 2 TCs
    tiles_per_par = -(-num_tiles // n_par)
    b_pad = n_par * tiles_per_par * bt
    n_pad = b_pad - B
    x_p = x if n_pad == 0 else jnp.pad(x, ((0, n_pad), (0, 0)))

    mv, nll_parts = pl.pallas_call(
        _bayes_gaussian_kernel,
        grid=(n_par, tiles_per_par),
        in_specs=[
            pl.BlockSpec((bt, K), lambda p, j: (p * tiles_per_par + j, 0)),  # x tile
            pl.BlockSpec((K, 1), lambda p, j: (0, 0)),                       # -2w
            pl.BlockSpec((K, 1), lambda p, j: (0, 0)),                       # 4w^2
            pl.BlockSpec(memory_space=pltpu.MemorySpace.SMEM),               # consts
        ],
        out_specs=(
            pl.BlockSpec((bt, 2), lambda p, j: (p * tiles_per_par + j, 0)),  # [m|v]
            pl.BlockSpec((1, 8, 128), lambda p, j: (p, 0, 0)),               # nll
        ),
        out_shape=(
            jax.ShapeDtypeStruct((b_pad, 2), jnp.float32),
            jax.ShapeDtypeStruct((n_par, 8, 128), jnp.float32),
        ),
        compiler_params=pltpu.CompilerParams(
            dimension_semantics=("parallel", "arbitrary"),
            vmem_limit_bytes=32 * 1024 * 1024,
        ),
    )(x_p, wm, wv, consts)

    # Subtract the (deterministic) NLL contribution of the zero-padded rows:
    # a pad row (x == 0) has mean = sum_w and var_ = 0.
    pad_corr = jnp.float32(n_pad) * (c0 - c2 * sum_w + c3 * sum_w * sum_w)
    nll = jnp.sum(nll_parts[:, 0, 0]) - pad_corr

    return (mv[:B, 0:1], mv[:B, 1:2]), nll


def init_params(key, input_units, output_units=1, scale=1.0):
    """Deterministic parameter init matching the PyTorch module shapes."""
    fan_in, fan_out = output_units, input_units
    bound = math.sqrt(6.0 / (fan_in + fan_out))
    params = jax.random.uniform(
        key, (input_units, output_units), jnp.float32, -bound, bound)
    params_var = jnp.log(jnp.ones((output_units,), jnp.float32)
                         * (input_units * scale))
    return params, params_var


if __name__ == "__main__":
    key = jax.random.PRNGKey(0)
    k_x, k_t, k_w = jax.random.split(key, 3)

    B = 50           # deliberately not a multiple of the tile -> exercises padding
    K = 32           # input_units
    O = 1            # output_units (module default)

    x = jax.random.uniform(k_x, (B, K), jnp.float32)        # probabilities in [0, 1]
    targets = jax.random.normal(k_t, (B,), jnp.float32)
    params, params_var = init_params(k_w, K, O, scale=1.0)

    # Forced 8-row tile: multi-tile grid, 2-way parallel axis, 14 pad rows.
    (mean_a, var_a), nll_a = bayes_gaussian_forward(
        x, targets, params, params_var, block_rows=8)
    # Auto tile selection: single padded 56-row tile.
    (mean_b, var_b), nll_b = bayes_gaussian_forward(x, targets, params, params_var)
    jax.block_until_ready((mean_a, var_a, nll_a, mean_b, var_b, nll_b))

    # Pure-JAX reference of the original PyTorch math (including its
    # targets[B] vs outputs_mean[B,1] broadcast producing a [B, B] matrix).
    inputs_mean = 1.0 - 2.0 * x
    inputs_var = 1.0 - inputs_mean ** 2
    ref_mean = inputs_mean @ params
    ref_var_ = inputs_var @ (params ** 2)
    var = jnp.exp(params_var)
    ref_var = ref_var_ + var
    ref_nll = jnp.sum(((targets[None, :] - ref_mean) ** 2 + ref_var_) / (2.0 * var)
                      + jnp.log(2.0 * math.pi * var) / 2.0)

    for om, ov, nl in ((mean_a, var_a, nll_a), (mean_b, var_b, nll_b)):
        assert om.shape == (B, 1) and ov.shape == (B, 1)
        assert jnp.allclose(om, ref_mean, atol=1e-4, rtol=1e-5)
        assert jnp.allclose(ov, ref_var, atol=1e-4, rtol=1e-5)
        assert jnp.allclose(nl, ref_nll, atol=1e-2, rtol=1e-3)

    print("KERNEL_OK")
</pallas_src>

<mosaic_0001>
module attributes {stable_mosaic.version = 11 : i64} {
  func.func @_bayes_gaussian_kernel(%arg0: i32, %arg1: i32, %arg2: memref<8x32xf32, #tpu.memory_space<vmem>>, %arg3: memref<32x1xf32, #tpu.memory_space<vmem>>, %arg4: memref<32x1xf32, #tpu.memory_space<vmem>>, %arg5: memref<8xf32, #tpu.memory_space<smem>>, %arg6: memref<8x2xf32, #tpu.memory_space<vmem>>, %arg7: memref<1x8x128xf32, #tpu.memory_space<vmem>>) attributes {dimension_semantics = [#tpu.dimension_semantics<parallel>, #tpu.dimension_semantics<arbitrary>], iteration_bounds = array<i64: 2, 4>, scalar_prefetch = 0 : i64, scratch_operands = 0 : i64, tpu.core_type = #tpu.core_type<tc>, window_params = [{transform_indices = @transform_0, window_bounds = array<i64: 8, 32>}, {pipeline_mode = #tpu.pipeline_mode<synchronous>, transform_indices = @transform_1, window_bounds = array<i64: 32, 1>}, {pipeline_mode = #tpu.pipeline_mode<synchronous>, transform_indices = @transform_2, window_bounds = array<i64: 32, 1>}, {transform_indices = @transform_3, window_bounds = array<i64: 8>}, {transform_indices = @transform_4, window_bounds = array<i64: 8, 2>}, {transform_indices = @transform_5, window_bounds = array<i64: 1, 8, 128>}]} {
    %c0 = arith.constant 0 : index
    %c0_0 = arith.constant 0 : index
    %0 = vector.load %arg2[%c0, %c0_0] : memref<8x32xf32, #tpu.memory_space<vmem>>, vector<8x32xf32>
    %1 = arith.mulf %0, %0 : vector<8x32xf32>
    %2 = arith.subf %0, %1 : vector<8x32xf32>
    %c0_1 = arith.constant 0 : index
    %c0_2 = arith.constant 0 : index
    %3 = vector.load %arg3[%c0_1, %c0_2] : memref<32x1xf32, #tpu.memory_space<vmem>>, vector<32x1xf32>
    %cst = arith.constant dense<0.000000e+00> : vector<8x1xf32>
    %4 = tpu.matmul %0, %3, %cst {dimension_numbers = #tpu.dot_dimension_numbers<[1], [0], [0], [1], [0, 0, 1, 1], [], []>} : vector<8x32xf32>, vector<32x1xf32>, vector<8x1xf32> -> vector<8x1xf32>
    %c3 = arith.constant 3 : index
    %5 = memref.load %arg5[%c3] : memref<8xf32, #tpu.memory_space<smem>>
    %6 = vector.broadcast %5 : f32 to vector<8x1xf32>
    %7 = arith.addf %4, %6 : vector<8x1xf32>
    %c0_3 = arith.constant 0 : index
    %c0_4 = arith.constant 0 : index
    %8 = vector.load %arg4[%c0_3, %c0_4] : memref<32x1xf32, #tpu.memory_space<vmem>>, vector<32x1xf32>
    %cst_5 = arith.constant dense<0.000000e+00> : vector<8x1xf32>
    %9 = tpu.matmul %2, %8, %cst_5 {dimension_numbers = #tpu.dot_dimension_numbers<[1], [0], [0], [1], [0, 0, 1, 1], [], []>} : vector<8x32xf32>, vector<32x1xf32>, vector<8x1xf32> -> vector<8x1xf32>
    %c0_6 = arith.constant 0 : index
    %c0_7 = arith.constant 0 : index
    %10 = vector.load %arg6[%c0_6, %c0_7] : memref<8x2xf32, #tpu.memory_space<vmem>>, vector<8x1xf32>
    tpu.vector_store %arg6[%c0_6, %c0_7], %7 {strides = array<i32>} : memref<8x2xf32, #tpu.memory_space<vmem>>, vector<8x1xf32>,
    %c4 = arith.constant 4 : index
    %11 = memref.load %arg5[%c4] : memref<8xf32, #tpu.memory_space<smem>>
    %12 = vector.broadcast %11 : f32 to vector<8x1xf32>
    %13 = arith.addf %9, %12 : vector<8x1xf32>
    %c0_8 = arith.constant 0 : index
    %c1 = arith.constant 1 : index
    %14 = vector.load %arg6[%c0_8, %c1] : memref<8x2xf32, #tpu.memory_space<vmem>>, vector<8x1xf32>
    tpu.vector_store %arg6[%c0_8, %c1], %13 {strides = array<i32>} : memref<8x2xf32, #tpu.memory_space<vmem>>, vector<8x1xf32>,
    %15 = vector.shape_cast %7 : vector<8x1xf32> to vector<1x8x1xf32>
    %cst_9 = arith.constant dense<0.000000e+00> : vector<1xf32>
    %16 = vector.multi_reduction <add>, %15, %cst_9 [1, 2] : vector<1x8x1xf32> to vector<1xf32>
    %17 = vector.shape_cast %16 : vector<1xf32> to vector<1x1x1xf32>
    %18 = vector.extract %17[0, 0, 0] : f32 from vector<1x1x1xf32>
    %19 = arith.mulf %7, %7 : vector<8x1xf32>
    %20 = vector.shape_cast %19 : vector<8x1xf32> to vector<1x8x1xf32>
    %cst_10 = arith.constant dense<0.000000e+00> : vector<1xf32>
    %21 = vector.multi_reduction <add>, %20, %cst_10 [1, 2] : vector<1x8x1xf32> to vector<1xf32>
    %22 = vector.shape_cast %21 : vector<1xf32> to vector<1x1x1xf32>
    %23 = vector.extract %22[0, 0, 0] : f32 from vector<1x1x1xf32>
    %24 = vector.shape_cast %9 : vector<8x1xf32> to vector<1x8x1xf32>
    %cst_11 = arith.constant dense<0.000000e+00> : vector<1xf32>
    %25 = vector.multi_reduction <add>, %24, %cst_11 [1, 2] : vector<1x8x1xf32> to vector<1xf32>
    %26 = vector.shape_cast %25 : vector<1xf32> to vector<1x1x1xf32>
    %27 = vector.extract %26[0, 0, 0] : f32 from vector<1x1x1xf32>
    %c0_12 = arith.constant 0 : index
    %28 = memref.load %arg5[%c0_12] : memref<8xf32, #tpu.memory_space<smem>>
    %cst_13 = arith.constant 8.000000e+00 : f32
    %29 = arith.mulf %cst_13, %28 : f32
    %c1_14 = arith.constant 1 : index
    %30 = memref.load %arg5[%c1_14] : memref<8xf32, #tpu.memory_space<smem>>
    %31 = arith.mulf %30, %18 : f32
    %32 = arith.subf %29, %31 : f32
    %c2 = arith.constant 2 : index
    %33 = memref.load %arg5[%c2] : memref<8xf32, #tpu.memory_space<smem>>
    %34 = arith.addf %23, %27 : f32
    %35 = arith.mulf %33, %34 : f32
    %36 = arith.addf %32, %35 : f32
    %c0_i32 = arith.constant 0 : i32
    %37 = arith.cmpi eq, %arg1, %c0_i32 : i32
    %38 = arith.extui %37 : i1 to i32
    %c0_i32_15 = arith.constant 0 : i32
    %39 = arith.cmpi ne, %38, %c0_i32_15 : i32
    scf.if %39 {
      %cst_22 = arith.constant 0.000000e+00 : f32
      %44 = vector.broadcast %cst_22 : f32 to vector<1x8x128xf32>
      %c0_23 = arith.constant 0 : index
      %c0_24 = arith.constant 0 : index
      %c0_25 = arith.constant 0 : index
      %45 = vector.load %arg7[%c0_23, %c0_24, %c0_25] : memref<1x8x128xf32, #tpu.memory_space<vmem>>, vector<1x8x128xf32>
      tpu.vector_store %arg7[%c0_23, %c0_24, %c0_25], %44 {strides = array<i32>} : memref<1x8x128xf32, #tpu.memory_space<vmem>>, vector<1x8x128xf32>,
    } else {
    }
    %c0_16 = arith.constant 0 : index
    %c0_17 = arith.constant 0 : index
    %c0_18 = arith.constant 0 : index
    %40 = vector.load %arg7[%c0_16, %c0_17, %c0_18] : memref<1x8x128xf32, #tpu.memory_space<vmem>>, vector<1x8x128xf32>
    %41 = vector.broadcast %36 : f32 to vector<1x8x128xf32>
    %42 = arith.addf %40, %41 : vector<1x8x128xf32>
    %c0_19 = arith.constant 0 : index
    %c0_20 = arith.constant 0 : index
    %c0_21 = arith.constant 0 : index
    %43 = vector.load %arg7[%c0_19, %c0_20, %c0_21] : memref<1x8x128xf32, #tpu.memory_space<vmem>>, vector<1x8x128xf32>
    tpu.vector_store %arg7[%c0_19, %c0_20, %c0_21], %42 {strides = array<i32>} : memref<1x8x128xf32, #tpu.memory_space<vmem>>, vector<1x8x128xf32>,
    return
  }
  func.func @transform_0(%arg0: i32, %arg1: i32) -> (i32, i32) {
    %c4_i32 = arith.constant 4 : i32
    %0 = arith.muli %arg0, %c4_i32 : i32
    %1 = arith.addi %0, %arg1 : i32
    %c0_i32 = arith.constant 0 : i32
    %c0_i32_0 = arith.constant 0 : i32
    return %1, %c0_i32 : i32, i32
  }
  func.func @transform_1(%arg0: i32, %arg1: i32) -> (i32, i32) {
    %c0_i32 = arith.constant 0 : i32
    %c0_i32_0 = arith.constant 0 : i32
    %c0_i32_1 = arith.constant 0 : i32
    return %c0_i32, %c0_i32_0 : i32, i32
  }
  func.func @transform_2(%arg0: i32, %arg1: i32) -> (i32, i32) {
    %c0_i32 = arith.constant 0 : i32
    %c0_i32_0 = arith.constant 0 : i32
    %c0_i32_1 = arith.constant 0 : i32
    return %c0_i32, %c0_i32_0 : i32, i32
  }
  func.func @transform_3(%arg0: i32, %arg1: i32) -> i32 {
    %c0_i32 = arith.constant 0 : i32
    %c0_i32_0 = arith.constant 0 : i32
    return %c0_i32 : i32
  }
  func.func @transform_4(%arg0: i32, %arg1: i32) -> (i32, i32) {
    %c4_i32 = arith.constant 4 : i32
    %0 = arith.muli %arg0, %c4_i32 : i32
    %1 = arith.addi %0, %arg1 : i32
    %c0_i32 = arith.constant 0 : i32
    %c0_i32_0 = arith.constant 0 : i32
    return %1, %c0_i32 : i32, i32
  }
  func.func @transform_5(%arg0: i32, %arg1: i32) -> (i32, i32, i32) {
    %c0_i32 = arith.constant 0 : i32
    %c0_i32_0 = arith.constant 0 : i32
    %c0_i32_1 = arith.constant 0 : i32
    return %arg0, %c0_i32, %c0_i32_0 : i32, i32, i32
  }
}

</mosaic_0001>

<llo_original>
// kernel: tpu_custom_call.1
$region0: #{tpu_custom_call.1}
  #allocation0 [shape = 'u32[]', space=smem, size = 0x4, offset = 0x4, fixed_abs, tag = 'smem constant byte address 0x4 - core index']
  #allocation1 [shape = 'u32[144,128]{1,0:T(1,128)}', space=vmem, size = 0x12000, scoped, tag = 'internal scratch']
  %s0 = inlined_call_operand.vmem [shape: f32[64,32], index: 0, kind: input, shape index: {}]
  %s1 = inlined_call_operand.vmem [shape: f32[32,1], index: 1, kind: input, shape index: {}]
  %s2 = inlined_call_operand.vmem [shape: f32[32,1], index: 2, kind: input, shape index: {}]
  %s3 = inlined_call_operand.vmem [shape: f32[8], index: 3, kind: input, shape index: {}]
  %s4 = inlined_call_operand.vmem [shape: f32[64,2], index: 4, kind: output, shape index: {0}]
  %s5 = inlined_call_operand.hbm [shape: f32[2,8,128], index: 5, kind: output, shape index: {1}]
  %6 = xla_tuple %s4, %s5
  %s7 = sld [smem:[#allocation0]]
  $region65: #{tpu_custom_call.1} parent=0
    _
  %s9 = ssub.s32 1, %s7
  %s10 = scalar_select 0, %s9, %s7
  $region1: #{tpu_custom_call.1} parent=0
    #allocation2 [shape = 'u8[512]{0}', space=smem, size = 0x200, scoped, tag = 'input window, operand 3, single buffered']
    #allocation3 [shape = 's32[2]{0}', space=sflag, size = 0x8, scoped, tag = 'scoped memory for tpu_custom_call.1']
    #allocation4 [shape = 's32[2]{0}', space=sflag, size = 0x8, scoped, tag = 'scoped memory for tpu_custom_call.1']
    #allocation5 [shape = 'u8[8192]{0}', space=vmem, size = 0x2000, scoped, tag = 'output window, operand 1']
    %11 = vsyncpa [#allocation4], 0
    %12 = vsyncpa [#allocation3], 0
    %s13 = scalar_lea.sflag [#allocation3], 1
    %14 = vsyncpa %s13, 0
    loop: start=0, step=1, limit=10
    $region2: #{tpu_custom_call.1} parent=1 // loop_pre_header
      _
    $region3: #{tpu_custom_call.1} parent=1 // loop_header
      %s16 = sphi 0, %s20
      %p17 = scmp.ge.s32.totalorder %s16, 10
      %s23 = sphi 0, %s35
      %s24 = sphi 0, %s31
      %s25 = sphi 0, %s23
      %s26 = sphi 0, %s24
      %s27 = sphi 0, %s25
      %s28 = sphi 0, %s26
      %s42 = sphi 0, %s44
      %s45 = sphi 0, %s42
      %s46 = sphi 0, %s45
      %s62 = sphi 0, %s46
      %s66 = sphi 0, %s66
      %s68 = sphi 0, %s66
      %s69 = sphi 0, %s68
      %s83 = sphi 0, %s69
      %s87 = sphi 0, %s87
      %s89 = sphi 0, %s87
      %s90 = sphi 0, %s89
      %s104 = sphi 0, %s90
      %s108 = sphi 0, %s108
      %s110 = sphi 0, %s108
      %s111 = sphi 0, %s110
      %s125 = sphi 0, %s111
      %s135 = sphi 0, %s137
      %s138 = sphi 0, %s135
      %s139 = sphi 0, %s138
      %s155 = sphi 0, %s139
      %s161 = sphi 0, %s163
      %s164 = sphi 0, %s161
      %s165 = sphi 0, %s164
      %s181 = sphi 0, %s165
    $region4: #{tpu_custom_call.1} parent=1 // loop_header_branch
      %19 = sbr.rel (%p17) target = $region8
    $region5: #{tpu_custom_call.1} parent=1 // loop_body
      %s21 = ssub.s32 %s16, 1
      %s22 = ssub.s32 %s16, 2
      %s29 = sadd.s32 1, %s24
      %p30 = scmp.ge.s32.totalorder %s29, 4
      %s31 = scalar_select %p30, 0, %s29
      %s32 = sadd.s32 1, %s23
      %s33 = scalar_select %p30, %s32, %s23
      %p34 = scmp.ge.s32.totalorder %s33, 2
      %s35 = scalar_select %p34, 0, %s33
      %s36 = smul.u32 %s23, 4
      %s37 = sadd.s32 %s36, %s24
      %s38 = smul.u32 %s35, 4
      %s39 = sadd.s32 %s38, %s31
      %s40 = ssub.s32 %s37, %s39
      %p41 = scmp.eq.s32.totalorder %s40, 0
      %s43 = sadd.s32 %s42, 1
      %s44 = scalar_select %p41, %s42, %s43
      %p47 = pneg %p41
      %p48 = scmp.eq.s32.totalorder %s16, 7
      %p49 = por %p47, %p48
      %p50 = scmp.ne.s32.totalorder %s42, %s45
      %p51 = scmp.eq.s32.totalorder %s16, 0
      %p52 = por %p50, %p51
      %p53 = scmp.ne.s32.totalorder %s42, %s45
      %p54 = scmp.eq.s32.totalorder %s21, 7
      %p55 = por %p53, %p54
      %p56 = scmp.ne.s32.totalorder %s45, %s46
      %p57 = scmp.eq.s32.totalorder %s21, 0
      %p58 = por %p56, %p57
      %p59 = scmp.ne.s32.totalorder %s45, %s46
      %p60 = scmp.eq.s32.totalorder %s22, 7
      %p61 = por %p59, %p60
      %p63 = scmp.ne.s32.totalorder %s46, %s62
      %p64 = scmp.eq.s32.totalorder %s22, 0
      %p65 = por %p63, %p64
      %s67 = sadd.s32 %s66, 1
      %p70 = scmp.eq.s32.totalorder %s16, 7
      %p71 = scmp.ne.s32.totalorder %s66, %s68
      %p72 = scmp.eq.s32.totalorder %s16, 0
      %p73 = por %p71, %p72
      %p74 = scmp.ne.s32.totalorder %s66, %s68
      %p75 = scmp.eq.s32.totalorder %s21, 7
      %p76 = por %p74, %p75
      %p77 = scmp.ne.s32.totalorder %s68, %s69
      %p78 = scmp.eq.s32.totalorder %s21, 0
      %p79 = por %p77, %p78
      %p80 = scmp.ne.s32.totalorder %s68, %s69
      %p81 = scmp.eq.s32.totalorder %s22, 7
      %p82 = por %p80, %p81
      %p84 = scmp.ne.s32.totalorder %s69, %s83
      %p85 = scmp.eq.s32.totalorder %s22, 0
      %p86 = por %p84, %p85
      %s88 = sadd.s32 %s87, 1
      %p91 = scmp.eq.s32.totalorder %s16, 7
      %p92 = scmp.ne.s32.totalorder %s87, %s89
      %p93 = scmp.eq.s32.totalorder %s16, 0
      %p94 = por %p92, %p93
      %p95 = scmp.ne.s32.totalorder %s87, %s89
      %p96 = scmp.eq.s32.totalorder %s21, 7
      %p97 = por %p95, %p96
      %p98 = scmp.ne.s32.totalorder %s89, %s90
      %p99 = scmp.eq.s32.totalorder %s21, 0
      %p100 = por %p98, %p99
      %p101 = scmp.ne.s32.totalorder %s89, %s90
      %p102 = scmp.eq.s32.totalorder %s22, 7
      %p103 = por %p101, %p102
      %p105 = scmp.ne.s32.totalorder %s90, %s104
      %p106 = scmp.eq.s32.totalorder %s22, 0
      %p107 = por %p105, %p106
      %s109 = sadd.s32 %s108, 1
      %p112 = scmp.eq.s32.totalorder %s16, 7
      %p113 = scmp.ne.s32.totalorder %s108, %s110
      %p114 = scmp.eq.s32.totalorder %s16, 0
      %p115 = por %p113, %p114
      %p116 = scmp.ne.s32.totalorder %s108, %s110
      %p117 = scmp.eq.s32.totalorder %s21, 7
      %p118 = por %p116, %p117
      %p119 = scmp.ne.s32.totalorder %s110, %s111
      %p120 = scmp.eq.s32.totalorder %s21, 0
      %p121 = por %p119, %p120
      %p122 = scmp.ne.s32.totalorder %s110, %s111
      %p123 = scmp.eq.s32.totalorder %s22, 7
      %p124 = por %p122, %p123
      %p126 = scmp.ne.s32.totalorder %s111, %s125
      %p127 = scmp.eq.s32.totalorder %s22, 0
      %p128 = por %p126, %p127
      %s129 = smul.u32 %s23, 4
      %s130 = sadd.s32 %s129, %s24
      %s131 = smul.u32 %s35, 4
      %s132 = sadd.s32 %s131, %s31
      %s133 = ssub.s32 %s130, %s132
      %p134 = scmp.eq.s32.totalorder %s133, 0
      %s136 = sadd.s32 %s135, 1
      %s137 = scalar_select %p134, %s135, %s136
      %p140 = pneg %p134
      %p141 = scmp.eq.s32.totalorder %s16, 7
      %p142 = por %p140, %p141
      %p143 = scmp.ne.s32.totalorder %s135, %s138
      %p144 = scmp.eq.s32.totalorder %s16, 0
      %p145 = por %p143, %p144
      %p146 = scmp.ne.s32.totalorder %s135, %s138
      %p147 = scmp.eq.s32.totalorder %s21, 7
      %p148 = por %p146, %p147
      %p149 = scmp.ne.s32.totalorder %s138, %s139
      %p150 = scmp.eq.s32.totalorder %s21, 0
      %p151 = por %p149, %p150
      %p152 = scmp.ne.s32.totalorder %s138, %s139
      %p153 = scmp.eq.s32.totalorder %s22, 7
      %p154 = por %p152, %p153
      %p156 = scmp.ne.s32.totalorder %s139, %s155
      %p157 = scmp.eq.s32.totalorder %s22, 0
      %p158 = por %p156, %p157
      %s159 = ssub.s32 %s23, %s35
      %p160 = scmp.eq.s32.totalorder %s159, 0
      %s162 = sadd.s32 %s161, 1
      %s163 = scalar_select %p160, %s161, %s162
      %p166 = pneg %p160
      %p167 = scmp.eq.s32.totalorder %s16, 7
      %p168 = por %p166, %p167
      %p169 = scmp.ne.s32.totalorder %s161, %s164
      %p170 = scmp.eq.s32.totalorder %s16, 0
      %p171 = por %p169, %p170
      %p172 = scmp.ne.s32.totalorder %s161, %s164
      %p173 = scmp.eq.s32.totalorder %s21, 7
      %p174 = por %p172, %p173
      %p175 = scmp.ne.s32.totalorder %s164, %s165
      %p176 = scmp.eq.s32.totalorder %s21, 0
      %p177 = por %p175, %p176
      %p178 = scmp.ne.s32.totalorder %s164, %s165
      %p179 = scmp.eq.s32.totalorder %s22, 7
      %p180 = por %p178, %p179
      %p182 = scmp.ne.s32.totalorder %s165, %s181
      %p183 = scmp.eq.s32.totalorder %s22, 0
      %p184 = por %p182, %p183
      %p185 = scmp.le.s32.totalorder 1, %s16
      %p186 = scmp.lt.s32.totalorder %s16, 9
      %p187 = pnand %p185, %p186
      %p188 = pneg %p187
      // Predicated region
      $region9: #{tpu_custom_call.1} parent=5 // pred_check
        _
      $region10: #{tpu_custom_call.1} parent=5 // pred_check_branch
        %190 = sbr.rel (%p187) target = $region12
      $region11: #{tpu_custom_call.1} parent=5 // pred_region
        %s191 = ssub.s32 %s16, 1
        // Predicated region
        $region13: #{tpu_custom_call.1} parent=11 // pred_check
          %p192 = pneg %p79
        $region14: #{tpu_custom_call.1} parent=11 // pred_check_branch
          %194 = sbr.rel (%p192) target = $region16
        $region15: #{tpu_custom_call.1} parent=11 // pred_region
          _
        $region16: #{tpu_custom_call.1} parent=11 // pred_fallthru
          _
        // Predicated region
        $region17: #{tpu_custom_call.1} parent=11 // pred_check
          %p195 = pneg %p100
        $region18: #{tpu_custom_call.1} parent=11 // pred_check_branch
          %197 = sbr.rel (%p195) target = $region20
        $region19: #{tpu_custom_call.1} parent=11 // pred_region
          _
        $region20: #{tpu_custom_call.1} parent=11 // pred_fallthru
          _
        // Predicated region
        $region21: #{tpu_custom_call.1} parent=11 // pred_check
          %p198 = pneg %p121
        $region22: #{tpu_custom_call.1} parent=11 // pred_check_branch
          %200 = sbr.rel (%p198) target = $region24
        $region23: #{tpu_custom_call.1} parent=11 // pred_region
          %s202 = ssub.s32 16, 16
          %203 = vsyncadd [#allocation4], %s202
          %s205 = sshll.u32 %s3, 4
          %s206 = int_to_ptr.vmem [resolvable:$true] %s205
          %208 = dma.vmem_to_smem %s206, 16, [#allocation2], [#allocation4]
        $region24: #{tpu_custom_call.1} parent=11 // pred_fallthru
          _
      $region12: #{tpu_custom_call.1} parent=5 // pred_fallthru
        _
      %p209 = scmp.lt.s32.totalorder %s16, 8
      // Predicated region
      $region25: #{tpu_custom_call.1} parent=5 // pred_check
        %p210 = pneg %p209
      $region26: #{tpu_custom_call.1} parent=5 // pred_check_branch
        %212 = sbr.rel (%p210) target = $region28
      $region27: #{tpu_custom_call.1} parent=5 // pred_region
        // Predicated region
        $region29: #{tpu_custom_call.1} parent=27 // pred_check
          %p213 = pneg %p52
        $region30: #{tpu_custom_call.1} parent=27 // pred_check_branch
          %215 = sbr.rel (%p213) target = $region32
        $region31: #{tpu_custom_call.1} parent=27 // pred_region
          %s216 = smul.u32 %s23, 4
          %s217 = sadd.s32 %s216, %s24
          %p218 = scmp.lt.s32.totalorder %s217, 7
          %s219 = scalar_select %p218, %s217, 7
          %s220 = smul.addr %s219, 8
          %s221 = scalar_lea.vmem %s0, %s220
          %s222 = smul.u32 %s23, 4
          %s223 = sadd.s32 %s222, %s24
        $region32: #{tpu_custom_call.1} parent=27 // pred_fallthru
          _
      $region28: #{tpu_custom_call.1} parent=5 // pred_fallthru
        _
      %p224 = scmp.le.s32.totalorder 1, %s16
      %p225 = scmp.lt.s32.totalorder %s16, 9
      %p226 = pnand %p224, %p225
      %p227 = pneg %p226
      // Predicated region
      $region33: #{tpu_custom_call.1} parent=5 // pred_check
        _
      $region34: #{tpu_custom_call.1} parent=5 // pred_check_branch
        %229 = sbr.rel (%p226) target = $region36
      $region35: #{tpu_custom_call.1} parent=5 // pred_region
        %s230 = ssub.s32 %s16, 1
        // Predicated region
        $region37: #{tpu_custom_call.1} parent=35 // pred_check
          %p231 = pneg %p121
        $region38: #{tpu_custom_call.1} parent=35 // pred_check_branch
          %233 = sbr.rel (%p231) target = $region40
        $region39: #{tpu_custom_call.1} parent=35 // pred_region
          %234 = dma.done [#allocation4], 16
        $region40: #{tpu_custom_call.1} parent=35 // pred_fallthru
          _
        %235 = sfence
        %s236 = smul.u32 %s25, 4
        %s237 = sadd.s32 %s236, %s26
        %p238 = scmp.lt.s32.totalorder %s237, 7
        %s239 = scalar_select %p238, %s237, 7
        %s240 = smul.addr %s239, 8
        %s241 = scalar_lea.vmem %s0, %s240
        %p242 = pneg %p58
        %p243 = pneg %p55
        %p244 = pneg %p79
        %p245 = pneg %p76
        %p246 = pneg %p100
        %p247 = pneg %p97
        %p248 = pneg %p121
        %p249 = pneg %p118
        %p250 = pneg %p151
        %p251 = pneg %p148
        %s252 = smul.u32 %s25, 4
        %s253 = sadd.s32 %s252, %s26
        %p254 = scmp.lt.s32.totalorder %s253, 7
        %s255 = scalar_select %p254, %s253, 7
        %s256 = smul.addr %s255, 8
        %s257 = scalar_lea.vmem %s4, %s256
        %p258 = pneg %p177
        %p259 = pneg %p174
        %s260 = sand.u32 %s164, 1
        %s261 = scalar_lea.sflag [#allocation3], %s260
        %s262 = sand.u32 %s164, 1
        %s263 = smul.addr %s262, 8
        %s264 = scalar_lea.vmem [#allocation5], %s263
        %s265 = smul.u32 %s25, 4
        %s266 = sadd.s32 %s265, %s26
        %p267 = scmp.lt.s32.totalorder %s266, 7
        %s268 = scalar_select %p267, %s266, 7
        %s269 = smul.addr %s268, 8
        %s270 = scalar_lea.vmem %s0, %s269
        %s271 = smul.u32 %s25, 4
        %s272 = sadd.s32 %s271, %s26
        %s273 = smul.u32 %s25, 4
        %s274 = sadd.s32 %s273, %s26
        %p275 = scmp.lt.s32.totalorder %s274, 7
        %s276 = scalar_select %p275, %s274, 7
        %s277 = smul.addr %s276, 8
        %s278 = scalar_lea.vmem %s4, %s277
        %s279 = smul.u32 %s25, 4
        %s280 = sadd.s32 %s279, %s26
        %v281 = vld [vmem:[%s270] sm:$0xff]
        %v282 = vmul.f32 %v281, %v281
        %v283 = vsub.f32 %v281, %v282
        %v284 = vld [vmem:[%s1] sm:$0xff]
        %v285 = vld [vmem:[%s1 + $0x8] sm:$0xff]
        %v286 = vld [vmem:[%s1 + $0x10] sm:$0xff]
        %v287 = vld [vmem:[%s1 + $0x18] sm:$0xff]
        %s288 = sld [smem:[#allocation2 + $0x3]]
        %v289 = vstv %s288
        %vm290 = vcmask 261120
        %v292 = vsel %vm290, %v281, 0
        %294 = vmatprep.subr.mxu0 0.0
        %295 = vmatpush1.msra.mxu0 %v284
        %296 = vmatprep.subr.mxu0 0.0
        %297 = vmatpush1.msra.mxu0 %v285
        %298 = vmatprep.subr.mxu0 0.0
        %299 = vmatpush1.msra.mxu0 %v286
        %300 = vmatprep.subr.mxu0 0.0
        %301 = vmatpush1.msra.mxu0 %v287
        %302 = vmatprep.subr.mxu0 0.0
        %303 = vmatpush1.msra.mxu0 0.0
        %304 = vmatprep.subr.mxu0 0.0
        %305 = vmatpush1.msra.mxu0 0.0
        %306 = vmatprep.subr.mxu0 0.0
        %307 = vmatpush1.msra.mxu0 0.0
        %308 = vmatprep.subr.mxu0 0.0
        %309 = vmatpush1.msra.mxu0 0.0
        %310 = vmatprep.subr.mxu0 0.0
        %311 = vmatpush1.msra.mxu0 0.0
        %312 = vmatprep.subr.mxu0 0.0
        %313 = vmatpush1.msra.mxu0 0.0
        %314 = vmatprep.subr.mxu0 0.0
        %315 = vmatpush1.msra.mxu0 0.0
        %316 = vmatprep.subr.mxu0 0.0
        %317 = vmatpush1.msra.mxu0 0.0
        %318 = vmatprep.subr.mxu0 0.0
        %319 = vmatpush1.msra.mxu0 0.0
        %320 = vmatprep.subr.mxu0 0.0
        %321 = vmatpush1.msra.mxu0 0.0
        %322 = vmatprep.subr.mxu0 0.0
        %323 = vmatpush1.msra.mxu0 0.0
        %324 = vmatprep.subr.mxu0 0.0
        %325 = vmatpush1.msra.mxu0 0.0
        %326 = vmatprep.subr.mxu0 0.0
        %327 = vmatpush1.msra.mxu0 0.0
        %328 = vmatprep.subr.mxu0 0.0
        %329 = vmatpush1.msra.mxu0 0.0
        %330 = vmatprep.subr.mxu0 0.0
        %331 = vmatpush1.msra.mxu0 0.0
        %332 = vmatprep.subr.mxu0 0.0
        %333 = vmatpush1.msra.mxu0 0.0
        %334 = vmatprep.subr.mxu0 0.0
        %335 = vmatpush1.msra.mxu0 0.0
        %336 = vmatprep.subr.mxu0 0.0
        %337 = vmatpush1.msra.mxu0 0.0
        %338 = vmatprep.subr.mxu0 0.0
        %339 = vmatpush1.msra.mxu0 0.0
        %340 = vmatprep.subr.mxu0 0.0
        %341 = vmatpush1.msra.mxu0 0.0
        %342 = vmatprep.subr.mxu0 0.0
        %343 = vmatpush1.msra.mxu0 0.0
        %344 = vmatprep.subr.mxu0 0.0
        %345 = vmatpush1.msra.mxu0 0.0
        %346 = vmatprep.subr.mxu0 0.0
        %347 = vmatpush1.msra.mxu0 0.0
        %348 = vmatprep.subr.mxu0 0.0
        %349 = vmatpush1.msra.mxu0 0.0
        %350 = vmatprep.subr.mxu0 0.0
        %351 = vmatpush1.msra.mxu0 0.0
        %352 = vmatprep.subr.mxu0 0.0
        %353 = vmatpush1.msra.mxu0 0.0
        %354 = vmatprep.subr.mxu0 0.0
        %355 = vmatpush1.msra.mxu0 0.0
        %356 = vmatprep.subr.mxu0 0.0
        %357 = vmatpush1.msra.mxu0 0.0
        %358 = vmatprep.mubr.f32.mxu0 0.0
        %359 = vmatmul.mubr.f32.gmra.mrb[0].mxu0 %v292
        %v360 = vpop.f32.mrb[0].mxu0
        %v361 = vadd.f32 %v289, %v360
        %v362 = vpop.f32.mrb[0].mxu0
        %363 = vdwg.mxu0
        %v364 = vld [vmem:[%s2] sm:$0xff]
        %v365 = vld [vmem:[%s2 + $0x8] sm:$0xff]
        %v366 = vld [vmem:[%s2 + $0x10] sm:$0xff]
        %v367 = vld [vmem:[%s2 + $0x18] sm:$0xff]
        %v369 = vsel %vm290, %v283, 0
        %371 = vmatprep.subr.mxu0 0.0
        %372 = vmatpush1.msra.mxu0 %v364
        %373 = vmatprep.subr.mxu0 0.0
        %374 = vmatpush1.msra.mxu0 %v365
        %375 = vmatprep.subr.mxu0 0.0
        %376 = vmatpush1.msra.mxu0 %v366
        %377 = vmatprep.subr.mxu0 0.0
        %378 = vmatpush1.msra.mxu0 %v367
        %379 = vmatprep.subr.mxu0 0.0
        %380 = vmatpush1.msra.mxu0 0.0
        %381 = vmatprep.subr.mxu0 0.0
        %382 = vmatpush1.msra.mxu0 0.0
        %383 = vmatprep.subr.mxu0 0.0
        %384 = vmatpush1.msra.mxu0 0.0
        %385 = vmatprep.subr.mxu0 0.0
        %386 = vmatpush1.msra.mxu0 0.0
        %387 = vmatprep.subr.mxu0 0.0
        %388 = vmatpush1.msra.mxu0 0.0
        %389 = vmatprep.subr.mxu0 0.0
        %390 = vmatpush1.msra.mxu0 0.0
        %391 = vmatprep.subr.mxu0 0.0
        %392 = vmatpush1.msra.mxu0 0.0
        %393 = vmatprep.subr.mxu0 0.0
        %394 = vmatpush1.msra.mxu0 0.0
        %395 = vmatprep.subr.mxu0 0.0
        %396 = vmatpush1.msra.mxu0 0.0
        %397 = vmatprep.subr.mxu0 0.0
        %398 = vmatpush1.msra.mxu0 0.0
        %399 = vmatprep.subr.mxu0 0.0
        %400 = vmatpush1.msra.mxu0 0.0
        %401 = vmatprep.subr.mxu0 0.0
        %402 = vmatpush1.msra.mxu0 0.0
        %403 = vmatprep.subr.mxu0 0.0
        %404 = vmatpush1.msra.mxu0 0.0
        %405 = vmatprep.subr.mxu0 0.0
        %406 = vmatpush1.msra.mxu0 0.0
        %407 = vmatprep.subr.mxu0 0.0
        %408 = vmatpush1.msra.mxu0 0.0
        %409 = vmatprep.subr.mxu0 0.0
        %410 = vmatpush1.msra.mxu0 0.0
        %411 = vmatprep.subr.mxu0 0.0
        %412 = vmatpush1.msra.mxu0 0.0
        %413 = vmatprep.subr.mxu0 0.0
        %414 = vmatpush1.msra.mxu0 0.0
        %415 = vmatprep.subr.mxu0 0.0
        %416 = vmatpush1.msra.mxu0 0.0
        %417 = vmatprep.subr.mxu0 0.0
        %418 = vmatpush1.msra.mxu0 0.0
        %419 = vmatprep.subr.mxu0 0.0
        %420 = vmatpush1.msra.mxu0 0.0
        %421 = vmatprep.subr.mxu0 0.0
        %422 = vmatpush1.msra.mxu0 0.0
        %423 = vmatprep.subr.mxu0 0.0
        %424 = vmatpush1.msra.mxu0 0.0
        %425 = vmatprep.subr.mxu0 0.0
        %426 = vmatpush1.msra.mxu0 0.0
        %427 = vmatprep.subr.mxu0 0.0
        %428 = vmatpush1.msra.mxu0 0.0
        %429 = vmatprep.subr.mxu0 0.0
        %430 = vmatpush1.msra.mxu0 0.0
        %431 = vmatprep.subr.mxu0 0.0
        %432 = vmatpush1.msra.mxu0 0.0
        %433 = vmatprep.subr.mxu0 0.0
        %434 = vmatpush1.msra.mxu0 0.0
        %435 = vmatprep.mubr.f32.mxu0 0.0
        %436 = vmatmul.mubr.f32.gmra.mrb[0].mxu0 %v369
        %v437 = vpop.f32.mrb[0].mxu0
        %v438 = vadd.f32 0.0, %v437
        %v439 = vpop.f32.mrb[0].mxu0
        %440 = vdwg.mxu0
        %vm441 = vcmask 7168
        %442 = vst.msk [vmem:[%s278] sm:$0xff] %vm441, %v361
        %s443 = sld [smem:[#allocation2 + $0x4]]
        %v444 = vstv %s443
        %v445 = vadd.f32 %v438, %v444
        %447 = vrot.lane.b32.xlu0 %v445, 1
        %v448 = vpop.permute.xlu0 %447
        %vm450 = vcmask 15368
        %451 = vst.msk [vmem:[%s278] sm:$0xff] %vm450, %v448
        %v452 = vsel %vm441, %v361, 0.0
        %453 = vadd.xlane.f32.xlu0 %v452
        %v454 = vpop.xlane.xlu0 %453
        %v455 = vrot.slane %v454, 4
        %v456 = vadd.f32 %v454, %v455
        %v457 = vrot.slane %v456, 2
        %v458 = vadd.f32 %v456, %v457
        %v459 = vrot.slane %v458, 1
        %v460 = vadd.f32 %v458, %v459
        %s461 = vtos %v460
        %v462 = vmul.f32 %v361, %v361
        %v463 = vsel %vm441, %v462, 0.0
        %464 = vadd.xlane.f32.xlu0 %v463
        %v465 = vpop.xlane.xlu0 %464
        %v466 = vrot.slane %v465, 4
        %v467 = vadd.f32 %v465, %v466
        %v468 = vrot.slane %v467, 2
        %v469 = vadd.f32 %v467, %v468
        %v470 = vrot.slane %v469, 1
        %v471 = vadd.f32 %v469, %v470
        %s472 = vtos %v471
        %v473 = vsel %vm441, %v438, 0.0
        %474 = vadd.xlane.f32.xlu0 %v473
        %v475 = vpop.xlane.xlu0 %474
        %v476 = vrot.slane %v475, 4
        %v477 = vadd.f32 %v475, %v476
        %v478 = vrot.slane %v477, 2
        %v479 = vadd.f32 %v477, %v478
        %v480 = vrot.slane %v479, 1
        %v481 = vadd.f32 %v479, %v480
        %s482 = vtos %v481
        %s483 = sld [smem:[#allocation2]]
        %s484 = smul.f32 %s483, 8.0
        %s485 = sld [smem:[#allocation2 + $0x1]]
        %s486 = smul.f32 %s485, %s461
        %s487 = ssub.f32 %s484, %s486
        %s488 = sld [smem:[#allocation2 + $0x2]]
        %s489 = sadd.f32 %s472, %s482
        %s490 = smul.f32 %s488, %s489
        %s491 = sadd.f32 %s487, %s490
        %p492 = scmp.eq.s32.totalorder %s26, 0
        // Predicated region
        $region41: #{tpu_custom_call.1} parent=35 // pred_check
          %p493 = pneg %p492
        $region42: #{tpu_custom_call.1} parent=35 // pred_check_branch
          %495 = sbr.rel (%p493) target = $region44
        $region43: #{tpu_custom_call.1} parent=35 // pred_region
          %496 = vst [vmem:[%s264] sm:$0xff] 0.0
        $region44: #{tpu_custom_call.1} parent=35 // pred_fallthru
          _
        %v497 = vld [vmem:[%s264] sm:$0xff]
        %v498 = vstv %s491
        %v499 = vadd.f32 %v497, %v498
        %500 = vst [vmem:[%s264] sm:$0xff] %v499
        %s501 = smul.u32 %s25, 4
        %s502 = sadd.s32 %s501, %s26
        %p503 = scmp.lt.s32.totalorder %s502, 7
        %s504 = scalar_select %p503, %s502, 7
        %s505 = smul.addr %s504, 8
        %s506 = scalar_lea.vmem %s4, %s505
        %s507 = sand.u32 %s164, 1
        %s508 = scalar_lea.sflag [#allocation3], %s507
        %s509 = sand.u32 %s164, 1
        %s510 = smul.addr %s509, 8
        %s511 = scalar_lea.vmem [#allocation5], %s510
        // Predicated region
        $region45: #{tpu_custom_call.1} parent=35 // pred_check
          %p512 = pneg %p148
        $region46: #{tpu_custom_call.1} parent=35 // pred_check_branch
          %514 = sbr.rel (%p512) target = $region48
        $region47: #{tpu_custom_call.1} parent=35 // pred_region
          %s515 = smul.u32 %s25, 4
          %s516 = sadd.s32 %s515, %s26
        $region48: #{tpu_custom_call.1} parent=35 // pred_fallthru
          _
        // Predicated region
        $region49: #{tpu_custom_call.1} parent=35 // pred_check
          %p517 = pneg %p174
        $region50: #{tpu_custom_call.1} parent=35 // pred_check_branch
          %519 = sbr.rel (%p517) target = $region52
        $region51: #{tpu_custom_call.1} parent=35 // pred_region
          %s521 = ssub.s32 128, 128
          %522 = vsyncadd %s508, %s521
          %s523 = smul.addr %s25, 128
          %s524 = scalar_lea.hbm %s5, %s523
          %s526 = sshll.u32 %s511, 4
          %s527 = int_to_ptr.vmem [resolvable:$true] %s526
          %529 = dma.vmem_to_hbm [thread:$0]  %s527, 128, %s524, %s508
        $region52: #{tpu_custom_call.1} parent=35 // pred_fallthru
          _
      $region36: #{tpu_custom_call.1} parent=5 // pred_fallthru
        _
      %p530 = scmp.le.s32.totalorder 2, %s16
      // Predicated region
      $region53: #{tpu_custom_call.1} parent=5 // pred_check
        %p531 = pneg %p530
      $region54: #{tpu_custom_call.1} parent=5 // pred_check_branch
        %533 = sbr.rel (%p531) target = $region56
      $region55: #{tpu_custom_call.1} parent=5 // pred_region
        %s534 = ssub.s32 %s16, 2
        // Predicated region
        $region57: #{tpu_custom_call.1} parent=55 // pred_check
          %p535 = pneg %p154
        $region58: #{tpu_custom_call.1} parent=55 // pred_check_branch
          %537 = sbr.rel (%p535) target = $region60
        $region59: #{tpu_custom_call.1} parent=55 // pred_region
          %s538 = smul.u32 %s27, 4
          %s539 = sadd.s32 %s538, %s28
          %p540 = scmp.lt.s32.totalorder %s539, 7
          %s541 = scalar_select %p540, %s539, 7
          %s542 = smul.addr %s541, 8
          %s543 = scalar_lea.vmem %s4, %s542
        $region60: #{tpu_custom_call.1} parent=55 // pred_fallthru
          _
        // Predicated region
        $region61: #{tpu_custom_call.1} parent=55 // pred_check
          %p544 = pneg %p180
        $region62: #{tpu_custom_call.1} parent=55 // pred_check_branch
          %546 = sbr.rel (%p544) target = $region64
        $region63: #{tpu_custom_call.1} parent=55 // pred_region
          %s547 = sand.u32 %s165, 1
          %s548 = scalar_lea.sflag [#allocation3], %s547
          %s549 = sand.u32 %s165, 1
          %s550 = smul.addr %s549, 8
          %s551 = scalar_lea.vmem [#allocation5], %s550
          %552 = dma.done %s548, 128
        $region64: #{tpu_custom_call.1} parent=55 // pred_fallthru
          _
      $region56: #{tpu_custom_call.1} parent=5 // pred_fallthru
        _
    $region6: #{tpu_custom_call.1} parent=1 // loop_footer
      %s20 = sadd.s32 1, %s16
    $region7: #{tpu_custom_call.1} parent=1 // loop_footer_branch
      %15 = sbr.rel target = $region3
    $region8: #{tpu_custom_call.1} parent=1 // loop_exit
      _
    %553 = vsyncpa [#allocation3], 1
    %s554 = scalar_lea.sflag [#allocation3], 1
    %555 = vsyncpa %s554, 1
    %556 = vsyncpa [#allocation4], 1
    %s557 = scalar_lea.sflag [#allocation4], 1
    %558 = vsyncpa %s557, 1

</llo_original>
